<compile_context>
chip_gen: v5e
topology: v5e:2x2
jax: 0.10.0
libtpu: 0.0.40
codegen_flags: <defaults>
</compile_context>

<pallas_src>
import jax
import jax.numpy as jnp
from jax.experimental import pallas as pl
from jax.experimental.pallas import tpu as pltpu


def _round_up(x: int, m: int) -> int:
    return ((x + m - 1) // m) * m


def _cdiv(a: int, b: int) -> int:
    return (a + b - 1) // b


def _make_attention_weight_kernel(t_actual: int, t_tile: int, n_t: int):
    """Builds the kernel with static T / tiling parameters closed over."""

    def kernel(hs_ref, h_ref, a_ref, m_sc, l_sc):
        # hs_ref: (BB, tT, D)       h_ref: (BB, D)
        # a_ref:  (BB, n_t*tT) f32  (resident across t; raw scores stashed here)
        # m_sc, l_sc: (BB, 1) f32   running max / running denominator
        t = pl.program_id(1)

        @pl.when(t == 0)
        def _():
            m_sc[...] = jnp.full_like(m_sc, -jnp.inf)
            l_sc[...] = jnp.zeros_like(l_sc)

        # ---- Scores for this T tile on the MXU (batched q=1 contraction) ----
        h3 = h_ref[...][:, None, :]                               # (BB, 1, D)
        s3 = jax.lax.dot_general(
            h3, hs_ref[...],
            dimension_numbers=(((2,), (2,)), ((0,), (0,))),       # 'bqd,bkd->bqk'
            preferred_element_type=jnp.float32)                   # (BB, 1, tT)
        s = s3[:, 0, :]                                           # (BB, tT) f32

        # Mask ragged-T positions to -inf (they vanish from max and denom).
        col = jax.lax.broadcasted_iota(jnp.int32, s.shape, 1) + t * t_tile
        s = jnp.where(col < t_actual, s, -jnp.inf)

        # Stash raw scores into the resident f32 output block (lane offset is
        # a multiple of 128 -> aligned dynamic store).
        start = pl.multiple_of(t * t_tile, 128)
        a_ref[:, pl.ds(start, t_tile)] = s

        # ---- Online softmax statistics (tiny, hidden under the hs DMA) ----
        m_prev = m_sc[...]
        m_new = jnp.maximum(m_prev, jnp.max(s, axis=1, keepdims=True))
        l_sc[...] = (l_sc[...] * jnp.exp(m_prev - m_new)
                     + jnp.sum(jnp.exp(s - m_new), axis=1, keepdims=True))
        m_sc[...] = m_new

        # ---- Finalize: one bounded-live-range pass per tile on last step ----
        @pl.when(t == n_t - 1)
        def _():
            m = m_sc[...]
            inv = pl.reciprocal(l_sc[...], approx=False)          # exact norm
            for j in range(n_t):                                  # static unroll
                blk = a_ref[:, j * t_tile:(j + 1) * t_tile]       # raw scores
                a_ref[:, j * t_tile:(j + 1) * t_tile] = jnp.exp(blk - m) * inv

    return kernel


def attention_weight(hs: jax.Array, h: jax.Array, *, t_tile: int | None = None) -> jax.Array:
    """hs: [B, T, D], h: [B, D] -> softmax attention weights [B, T]."""
    B, T, D = hs.shape
    assert h.shape == (B, D)
    in_dtype = hs.dtype
    h = h.astype(in_dtype)
    itemsize = jnp.dtype(in_dtype).itemsize

    BB = 8                                   # sublane-dense batch block
    D_pad = _round_up(D, 128)                # lane-padded width of hs in VMEM

    # Tile sizing: ~4 MiB of actual hs bytes per grid step, capped so the
    # double-buffered (lane-padded) hs block stays inside a fixed VMEM budget
    # (safe on v7x's 64 MiB/TC as well as v5e/v6e's 128 MiB).
    t_cap = _round_up(T, 128)
    if t_tile is None:
        target_step_bytes = 4 * 1024 * 1024
        hs_vmem_budget = 24 * 1024 * 1024
        t_by_target = target_step_bytes // max(1, BB * D * itemsize)
        t_by_vmem = hs_vmem_budget // max(1, 2 * BB * D_pad * itemsize)
        t_tile = min(t_cap, max(128, (min(t_by_target, t_by_vmem) // 128) * 128))
    else:
        t_tile = max(128, (int(t_tile) // 128) * 128)

    n_t = _cdiv(T, t_tile)
    n_b = _cdiv(B, BB)
    T_pad = n_t * t_tile

    kernel = _make_attention_weight_kernel(T, t_tile, n_t)

    cost = pl.CostEstimate(
        flops=2 * B * T * D,
        transcendentals=2 * B * T,
        bytes_accessed=(B * T * D + B * D) * itemsize + B * T_pad * 4,
    )

    # VMEM accounting: double-buffered lane-padded hs block + h + resident
    # f32 output block (+ slack); clamp well under v7x physical (64 MiB/TC).
    vmem_est = (2 * BB * t_tile * D_pad * itemsize
                + 2 * BB * D_pad * itemsize
                + 2 * BB * T_pad * 4
                + (1 << 20))
    vmem_limit = int(max(32 * 1024 * 1024,
                         min(vmem_est + 4 * 1024 * 1024, 56 * 1024 * 1024)))

    out = pl.pallas_call(
        kernel,
        out_shape=jax.ShapeDtypeStruct((B, T_pad), jnp.float32),
        grid=(n_b, n_t),
        in_specs=[
            pl.BlockSpec((BB, t_tile, D), lambda b, t: (b, t, 0)),   # hs tile
            pl.BlockSpec((BB, D), lambda b, t: (b, 0)),              # h rows (resident over t)
        ],
        out_specs=pl.BlockSpec((BB, T_pad), lambda b, t: (b, 0)),    # resident accumulator
        scratch_shapes=[pltpu.VMEM((BB, 1), jnp.float32),            # running max
                        pltpu.VMEM((BB, 1), jnp.float32)],           # running denom
        compiler_params=pltpu.CompilerParams(
            dimension_semantics=("parallel", "arbitrary"),
            vmem_limit_bytes=vmem_limit,
        ),
        cost_estimate=cost,
    )(hs, h)

    out = out[:, :T]
    if out.dtype != in_dtype:
        out = out.astype(in_dtype)
    return out


def _reference(hs, h):
    s = jnp.sum(hs * h[:, None, :], axis=2)
    return jax.nn.softmax(s, axis=1)


if __name__ == "__main__":
    key = jax.random.PRNGKey(0)
    k1, k2, k3, k4 = jax.random.split(key, 4)

    # Tolerance allows for MXU matmul precision on f32 inputs.
    TOL = 2e-3

    # Small shapes consistent with the module.
    B, T, D = 2, 8, 32
    hs = jax.random.normal(k1, (B, T, D), dtype=jnp.float32)
    h = jax.random.normal(k2, (B, D), dtype=jnp.float32)

    a = jax.block_until_ready(attention_weight(hs, h))
    a_ref = _reference(hs, h)
    assert a.shape == (B, T)
    assert jnp.allclose(a, a_ref, atol=TOL, rtol=TOL), "mismatch vs reference (small)"
    assert jnp.allclose(jnp.sum(a, axis=1), jnp.ones((B,)), atol=1e-4)

    # Second check: exercises multi-T-tile epilogue, ragged last T tile
    # (T=300, forced tT=128 -> nT=3) and ragged batch block (B=9 -> nB=2).
    B2, T2, D2 = 9, 300, 64
    hs2 = jax.random.normal(k3, (B2, T2, D2), dtype=jnp.float32)
    h2 = jax.random.normal(k4, (B2, D2), dtype=jnp.float32)

    a2 = jax.block_until_ready(attention_weight(hs2, h2, t_tile=128))
    a2_ref = _reference(hs2, h2)
    assert a2.shape == (B2, T2)
    assert jnp.allclose(a2, a2_ref, atol=TOL, rtol=TOL), "mismatch vs reference (tiled)"
    assert jnp.allclose(jnp.sum(a2, axis=1), jnp.ones((B2,)), atol=1e-4)

    print("KERNEL_OK")
</pallas_src>

<mosaic_0001>
module attributes {stable_mosaic.version = 11 : i64} {
  func.func @kernel(%arg0: i32, %arg1: i32, %arg2: memref<8x128x32xf32, #tpu.memory_space<vmem>>, %arg3: memref<8x32xf32, #tpu.memory_space<vmem>>, %arg4: memref<8x128xf32, #tpu.memory_space<vmem>>, %arg5: memref<8x1xf32, #tpu.memory_space<vmem>>, %arg6: memref<8x1xf32, #tpu.memory_space<vmem>>) attributes {dimension_semantics = [#tpu.dimension_semantics<parallel>, #tpu.dimension_semantics<arbitrary>], iteration_bounds = array<i64: 1, 1>, scalar_prefetch = 0 : i64, scratch_operands = 2 : i64, tpu.core_type = #tpu.core_type<tc>, window_params = [{transform_indices = @transform_0, window_bounds = array<i64: 8, 128, 32>}, {transform_indices = @transform_1, window_bounds = array<i64: 8, 32>}, {transform_indices = @transform_2, window_bounds = array<i64: 8, 128>}]} {
    %c0_i32 = arith.constant 0 : i32
    %0 = arith.cmpi eq, %arg1, %c0_i32 : i32
    %1 = arith.extui %0 : i1 to i32
    %c0_i32_0 = arith.constant 0 : i32
    %2 = arith.cmpi ne, %1, %c0_i32_0 : i32
    scf.if %2 {
      %cst_20 = arith.constant 0xFF800000 : f32
      %39 = vector.broadcast %cst_20 : f32 to vector<8x1xf32>
      %c0_21 = arith.constant 0 : index
      %c0_22 = arith.constant 0 : index
      %40 = vector.load %arg5[%c0_21, %c0_22] : memref<8x1xf32, #tpu.memory_space<vmem>>, vector<8x1xf32>
      tpu.vector_store %arg5[%c0_21, %c0_22], %39 {strides = array<i32>} : memref<8x1xf32, #tpu.memory_space<vmem>>, vector<8x1xf32>,
      %cst_23 = arith.constant 0.000000e+00 : f32
      %41 = vector.broadcast %cst_23 : f32 to vector<8x1xf32>
      %c0_24 = arith.constant 0 : index
      %c0_25 = arith.constant 0 : index
      %42 = vector.load %arg6[%c0_24, %c0_25] : memref<8x1xf32, #tpu.memory_space<vmem>>, vector<8x1xf32>
      tpu.vector_store %arg6[%c0_24, %c0_25], %41 {strides = array<i32>} : memref<8x1xf32, #tpu.memory_space<vmem>>, vector<8x1xf32>,
    } else {
    }
    %c0 = arith.constant 0 : index
    %c0_1 = arith.constant 0 : index
    %3 = vector.load %arg3[%c0, %c0_1] : memref<8x32xf32, #tpu.memory_space<vmem>>, vector<8x32xf32>
    %4 = vector.shape_cast %3 : vector<8x32xf32> to vector<8x1x32xf32>
    %c0_2 = arith.constant 0 : index
    %c0_3 = arith.constant 0 : index
    %c0_4 = arith.constant 0 : index
    %5 = vector.load %arg2[%c0_2, %c0_3, %c0_4] : memref<8x128x32xf32, #tpu.memory_space<vmem>>, vector<8x128x32xf32>
    %cst = arith.constant dense<0.000000e+00> : vector<8x1x128xf32>
    %6 = tpu.matmul %4, %5, %cst {dimension_numbers = #tpu.dot_dimension_numbers<[2], [2], [1], [1], [0, 0, 0, 1, 1, 1], [0], [0]>} : vector<8x1x32xf32>, vector<8x128x32xf32>, vector<8x1x128xf32> -> vector<8x1x128xf32>
    %7 = vector.shape_cast %6 : vector<8x1x128xf32> to vector<8x128xf32>
    %8 = tpu.iota {dimensions = array<i32: 1>} : vector<8x128xi32>
    %c128_i32 = arith.constant 128 : i32
    %9 = arith.muli %arg1, %c128_i32 : i32
    %10 = vector.broadcast %9 : i32 to vector<8x128xi32>
    %11 = arith.addi %8, %10 : vector<8x128xi32>
    %c8_i32 = arith.constant 8 : i32
    %12 = vector.broadcast %c8_i32 : i32 to vector<8x128xi32>
    %13 = arith.cmpi slt, %11, %12 : vector<8x128xi32>
    %cst_5 = arith.constant 0xFF800000 : f32
    %14 = vector.broadcast %cst_5 : f32 to vector<8x128xf32>
    %15 = arith.select %13, %7, %14 : vector<8x128xi1>, vector<8x128xf32>
    %c128_i32_6 = arith.constant 128 : i32
    %16 = arith.muli %arg1, %c128_i32_6 : i32
    %17 = tpu.assume_multiple %16, 128 : i32
    %c0_7 = arith.constant 0 : index
    %18 = arith.index_cast %17 : i32 to index
    %19 = vector.load %arg4[%c0_7, %18] : memref<8x128xf32, #tpu.memory_space<vmem>>, vector<8x128xf32>
    tpu.vector_store %arg4[%c0_7, %18], %15 {strides = array<i32>} : memref<8x128xf32, #tpu.memory_space<vmem>>, vector<8x128xf32>,
    %c0_8 = arith.constant 0 : index
    %c0_9 = arith.constant 0 : index
    %20 = vector.load %arg5[%c0_8, %c0_9] : memref<8x1xf32, #tpu.memory_space<vmem>>, vector<8x1xf32>
    %cst_10 = arith.constant dense<0xFF800000> : vector<8xf32>
    %21 = vector.multi_reduction <maximumf>, %15, %cst_10 [1] : vector<8x128xf32> to vector<8xf32>
    %22 = vector.shape_cast %21 : vector<8xf32> to vector<8x1xf32>
    %23 = arith.maximumf %20, %22 : vector<8x1xf32>
    %c0_11 = arith.constant 0 : index
    %c0_12 = arith.constant 0 : index
    %24 = vector.load %arg6[%c0_11, %c0_12] : memref<8x1xf32, #tpu.memory_space<vmem>>, vector<8x1xf32>
    %25 = arith.subf %20, %23 : vector<8x1xf32>
    %26 = math.exp %25 : vector<8x1xf32>
    %27 = arith.mulf %24, %26 : vector<8x1xf32>
    %28 = vector.broadcast %23 : vector<8x1xf32> to vector<8x128xf32>
    %29 = arith.subf %15, %28 : vector<8x128xf32>
    %30 = math.exp %29 : vector<8x128xf32>
    %cst_13 = arith.constant dense<0.000000e+00> : vector<8xf32>
    %31 = vector.multi_reduction <add>, %30, %cst_13 [1] : vector<8x128xf32> to vector<8xf32>
    %32 = vector.shape_cast %31 : vector<8xf32> to vector<8x1xf32>
    %33 = arith.addf %27, %32 : vector<8x1xf32>
    %c0_14 = arith.constant 0 : index
    %c0_15 = arith.constant 0 : index
    %34 = vector.load %arg6[%c0_14, %c0_15] : memref<8x1xf32, #tpu.memory_space<vmem>>, vector<8x1xf32>
    tpu.vector_store %arg6[%c0_14, %c0_15], %33 {strides = array<i32>} : memref<8x1xf32, #tpu.memory_space<vmem>>, vector<8x1xf32>,
    %c0_16 = arith.constant 0 : index
    %c0_17 = arith.constant 0 : index
    %35 = vector.load %arg5[%c0_16, %c0_17] : memref<8x1xf32, #tpu.memory_space<vmem>>, vector<8x1xf32>
    tpu.vector_store %arg5[%c0_16, %c0_17], %23 {strides = array<i32>} : memref<8x1xf32, #tpu.memory_space<vmem>>, vector<8x1xf32>,
    %c0_i32_18 = arith.constant 0 : i32
    %36 = arith.cmpi eq, %arg1, %c0_i32_18 : i32
    %37 = arith.extui %36 : i1 to i32
    %c0_i32_19 = arith.constant 0 : i32
    %38 = arith.cmpi ne, %37, %c0_i32_19 : i32
    scf.if %38 {
      %c0_20 = arith.constant 0 : index
      %c0_21 = arith.constant 0 : index
      %39 = vector.load %arg5[%c0_20, %c0_21] : memref<8x1xf32, #tpu.memory_space<vmem>>, vector<8x1xf32>
      %c0_22 = arith.constant 0 : index
      %c0_23 = arith.constant 0 : index
      %40 = vector.load %arg6[%c0_22, %c0_23] : memref<8x1xf32, #tpu.memory_space<vmem>>, vector<8x1xf32>
      %41 = tpu.reciprocal %40 : vector<8x1xf32> -> vector<8x1xf32>
      %c0_24 = arith.constant 0 : index
      %c0_25 = arith.constant 0 : index
      %42 = vector.load %arg4[%c0_24, %c0_25] : memref<8x128xf32, #tpu.memory_space<vmem>>, vector<8x128xf32>
      %43 = vector.broadcast %39 : vector<8x1xf32> to vector<8x128xf32>
      %44 = arith.subf %42, %43 : vector<8x128xf32>
      %45 = math.exp %44 : vector<8x128xf32>
      %46 = vector.broadcast %41 : vector<8x1xf32> to vector<8x128xf32>
      %47 = arith.mulf %45, %46 : vector<8x128xf32>
      %c0_26 = arith.constant 0 : index
      %c0_27 = arith.constant 0 : index
      %48 = vector.load %arg4[%c0_26, %c0_27] : memref<8x128xf32, #tpu.memory_space<vmem>>, vector<8x128xf32>
      tpu.vector_store %arg4[%c0_26, %c0_27], %47 {strides = array<i32>} : memref<8x128xf32, #tpu.memory_space<vmem>>, vector<8x128xf32>,
    } else {
    }
    return
  }
  func.func @transform_0(%arg0: i32, %arg1: i32) -> (i32, i32, i32) {
    %c0_i32 = arith.constant 0 : i32
    %c0_i32_0 = arith.constant 0 : i32
    return %arg0, %arg1, %c0_i32 : i32, i32, i32
  }
  func.func @transform_1(%arg0: i32, %arg1: i32) -> (i32, i32) {
    %c0_i32 = arith.constant 0 : i32
    %c0_i32_0 = arith.constant 0 : i32
    return %arg0, %c0_i32 : i32, i32
  }
  func.func @transform_2(%arg0: i32, %arg1: i32) -> (i32, i32) {
    %c0_i32 = arith.constant 0 : i32
    %c0_i32_0 = arith.constant 0 : i32
    return %arg0, %c0_i32 : i32, i32
  }
}

</mosaic_0001>

<llo_original>
// kernel: tpu_custom_call.1
$region0: #{tpu_custom_call.1}
  #allocation0 [shape = 'u32[]', space=smem, size = 0x4, offset = 0x4, fixed_abs, tag = 'smem constant byte address 0x4 - core index']
  #allocation1 [shape = 'u32[72,128]{1,0:T(1,128)}', space=vmem, size = 0x9000, scoped, tag = 'internal scratch']
  #allocation2 [shape = 'f32[8,1]{1,0:T(8,128)}', space=vmem, size = 0x1000, scoped, tag = 'scratch operand']
  #allocation3 [shape = 'f32[8,1]{1,0:T(8,128)}', space=vmem, size = 0x1000, scoped, tag = 'scratch operand']
  #allocation10 [shape = 's32[]', space=sflag, size = 0x4, offset = 0, fixed_abs, tag = 'sflag constant byte address 0x0 - dummy sync flag']
  %s0 = inlined_call_operand.hbm [shape: f32[2,8,32], index: 0, kind: input, shape index: {}]
  %s1 = inlined_call_operand.hbm [shape: f32[2,32], index: 1, kind: input, shape index: {}]
  %s2 = inlined_call_operand.hbm [shape: f32[2,128], index: 2, kind: output, shape index: {}]
  %s3 = sld [smem:[#allocation0]]
  $region34: #{tpu_custom_call.1} parent=0
    _
  %s5 = ssub.s32 1, %s3
  %s6 = scalar_select 0, %s5, %s3
  $region1: #{tpu_custom_call.1} parent=0
    #allocation4 [shape = 'u8[524288]{0}', space=vmem, size = 0x80000, scoped, tag = 'input window, operand 0, single buffered']
    #allocation5 [shape = 's32[1]{0}', space=sflag, size = 0x4, scoped, tag = 'scoped memory for tpu_custom_call.1']
    #allocation6 [shape = 's32[1]{0}', space=sflag, size = 0x4, scoped, tag = 'scoped memory for tpu_custom_call.1']
    #allocation7 [shape = 'u8[4096]{0}', space=vmem, size = 0x1000, scoped, tag = 'input window, operand 1, single buffered']
    #allocation8 [shape = 's32[1]{0}', space=sflag, size = 0x4, scoped, tag = 'scoped memory for tpu_custom_call.1']
    #allocation9 [shape = 'u8[4096]{0}', space=vmem, size = 0x1000, scoped, tag = 'output window, operand 0, single buffered']
    %7 = vsyncpa [#allocation5], 0
    %8 = vsyncpa [#allocation8], 0
    %9 = vsyncpa [#allocation6], 0
    // Predicated region
    $region2: #{tpu_custom_call.1} parent=1 // pred_check
      _
    $region3: #{tpu_custom_call.1} parent=1 // pred_check_branch
      %11 = sbr.rel (0) target = $region5
    $region4: #{tpu_custom_call.1} parent=1 // pred_region
      #allocation11 [shape = 'u32[6]{0}', space=smem, size = 0x18, scoped, tag = 'DMA stride descriptor']
      %13 = vsyncadd [#allocation5], 16128
      %s15 = sshll.u32 1, 14
      %s16 = sxor.u32 4294967295, %s15
      %s18 = sld [smem:[#allocation0]]
      %s19 = sadd.s32 2, %s18
      %s21 = sshll.u32 7, 26
      %s22 = sxor.u32 4294967295, %s21
      %s23 = sand.u32 0, %s22
      %s24 = sshll.u32 %s19, 26
      %s25 = sor.u32 %s23, %s24
      %s26 = sshll.u32 %s0, 4
      %s27 = int_to_ptr.hbm [resolvable:$true] %s26
      %s28 = sshll.u32 [#allocation4], 4
      %s29 = int_to_ptr.vmem [resolvable:$true] %s28
      %35 = sst [smem:[#allocation11]] 128
      %s36 = scalar_lea.smem [#allocation11], 1
      %37 = sst [smem:[%s36]] 2048
      %s38 = scalar_lea.smem [#allocation11], 2
      %39 = sst [smem:[%s38]] 1
      %s40 = scalar_lea.smem [#allocation11], 3
      %41 = sst [smem:[%s40]] 128
      %s42 = scalar_lea.smem [#allocation11], 4
      %43 = sst [smem:[%s42]] 128
      %s44 = scalar_lea.smem [#allocation11], 5
      %45 = sst [smem:[%s44]] 8
      %47 = dma.general %s27, 256, %s29, [#allocation5], [#allocation10], [#allocation11], %s25, 0
    $region5: #{tpu_custom_call.1} parent=1 // pred_fallthru
      _
    // Predicated region
    $region6: #{tpu_custom_call.1} parent=1 // pred_check
      _
    $region7: #{tpu_custom_call.1} parent=1 // pred_check_branch
      %49 = sbr.rel (0) target = $region9
    $region8: #{tpu_custom_call.1} parent=1 // pred_region
      %51 = vsyncadd [#allocation8], 96
      %s52 = sshll.u32 %s1, 4
      %s53 = int_to_ptr.hbm [resolvable:$true] %s52
      %s54 = sshll.u32 [#allocation7], 4
      %s55 = int_to_ptr.vmem [resolvable:$true] %s54
      %60 = dma.hbm_to_vmem [thread:$0]  %s53, 32, %s55, [#allocation8], 32, 32, 2
    $region9: #{tpu_custom_call.1} parent=1 // pred_fallthru
      _
    // Predicated region
    $region10: #{tpu_custom_call.1} parent=1 // pred_check
      _
    $region11: #{tpu_custom_call.1} parent=1 // pred_check_branch
      %62 = sbr.rel (0) target = $region13
    $region12: #{tpu_custom_call.1} parent=1 // pred_region
      %64 = dma.done [#allocation5], 16384
    $region13: #{tpu_custom_call.1} parent=1 // pred_fallthru
      _
    // Predicated region
    $region14: #{tpu_custom_call.1} parent=1 // pred_check
      _
    $region15: #{tpu_custom_call.1} parent=1 // pred_check_branch
      %66 = sbr.rel (0) target = $region17
    $region16: #{tpu_custom_call.1} parent=1 // pred_region
      %68 = dma.done [#allocation8], 128
    $region17: #{tpu_custom_call.1} parent=1 // pred_fallthru
      _
    %p69 = scmp.eq.s32.totalorder 0, 0
    // Predicated region
    $region18: #{tpu_custom_call.1} parent=1 // pred_check
      %p70 = pneg %p69
    $region19: #{tpu_custom_call.1} parent=1 // pred_check_branch
      %72 = sbr.rel (%p70) target = $region21
    $region20: #{tpu_custom_call.1} parent=1 // pred_region
      %vm73 = vcmask 7168
      %74 = vst.msk [vmem:[#allocation2] sm:$0xff] %vm73, -inf
      %75 = vst.msk [vmem:[#allocation3] sm:$0xff] %vm73, 0.0
    $region21: #{tpu_custom_call.1} parent=1 // pred_fallthru
      _
    %v76 = vld [vmem:[#allocation7] sm:$0xff]
    %v78 = vrot.slane %v76, 1
    %v79 = vrot.slane %v76, 2
    %v80 = vrot.slane %v76, 3
    %v81 = vrot.slane %v76, 4
    %v82 = vrot.slane %v76, 5
    %v83 = vrot.slane %v76, 6
    %v84 = vrot.slane %v76, 7
    %v85 = vld [vmem:[#allocation4] sm:$0xff]
    %v86 = vld [vmem:[#allocation4 + $0x8] sm:$0xff]
    %v87 = vld [vmem:[#allocation4 + $0x10] sm:$0xff]
    %v88 = vld [vmem:[#allocation4 + $0x18] sm:$0xff]
    %v89 = vld [vmem:[#allocation4 + $0x20] sm:$0xff]
    %v90 = vld [vmem:[#allocation4 + $0x28] sm:$0xff]
    %v91 = vld [vmem:[#allocation4 + $0x30] sm:$0xff]
    %v92 = vld [vmem:[#allocation4 + $0x38] sm:$0xff]
    %v93 = vld [vmem:[#allocation4 + $0x40] sm:$0xff]
    %v94 = vld [vmem:[#allocation4 + $0x48] sm:$0xff]
    %v95 = vld [vmem:[#allocation4 + $0x50] sm:$0xff]
    %v96 = vld [vmem:[#allocation4 + $0x58] sm:$0xff]
    %v97 = vld [vmem:[#allocation4 + $0x60] sm:$0xff]
    %v98 = vld [vmem:[#allocation4 + $0x68] sm:$0xff]
    %v99 = vld [vmem:[#allocation4 + $0x70] sm:$0xff]
    %v100 = vld [vmem:[#allocation4 + $0x78] sm:$0xff]
    %v101 = vld [vmem:[#allocation4 + $0x80] sm:$0xff]
    %v102 = vld [vmem:[#allocation4 + $0x88] sm:$0xff]
    %v103 = vld [vmem:[#allocation4 + $0x90] sm:$0xff]
    %v104 = vld [vmem:[#allocation4 + $0x98] sm:$0xff]
    %v105 = vld [vmem:[#allocation4 + $0xa0] sm:$0xff]
    %v106 = vld [vmem:[#allocation4 + $0xa8] sm:$0xff]
    %v107 = vld [vmem:[#allocation4 + $0xb0] sm:$0xff]
    %v108 = vld [vmem:[#allocation4 + $0xb8] sm:$0xff]
    %v109 = vld [vmem:[#allocation4 + $0xc0] sm:$0xff]
    %v110 = vld [vmem:[#allocation4 + $0xc8] sm:$0xff]
    %v111 = vld [vmem:[#allocation4 + $0xd0] sm:$0xff]
    %v112 = vld [vmem:[#allocation4 + $0xd8] sm:$0xff]
    %v113 = vld [vmem:[#allocation4 + $0xe0] sm:$0xff]
    %v114 = vld [vmem:[#allocation4 + $0xe8] sm:$0xff]
    %v115 = vld [vmem:[#allocation4 + $0xf0] sm:$0xff]
    %v116 = vld [vmem:[#allocation4 + $0xf8] sm:$0xff]
    %v117 = vld [vmem:[#allocation4 + $0x100] sm:$0xff]
    %v118 = vld [vmem:[#allocation4 + $0x108] sm:$0xff]
    %v119 = vld [vmem:[#allocation4 + $0x110] sm:$0xff]
    %v120 = vld [vmem:[#allocation4 + $0x118] sm:$0xff]
    %v121 = vld [vmem:[#allocation4 + $0x120] sm:$0xff]
    %v122 = vld [vmem:[#allocation4 + $0x128] sm:$0xff]
    %v123 = vld [vmem:[#allocation4 + $0x130] sm:$0xff]
    %v124 = vld [vmem:[#allocation4 + $0x138] sm:$0xff]
    %v125 = vld [vmem:[#allocation4 + $0x140] sm:$0xff]
    %v126 = vld [vmem:[#allocation4 + $0x148] sm:$0xff]
    %v127 = vld [vmem:[#allocation4 + $0x150] sm:$0xff]
    %v128 = vld [vmem:[#allocation4 + $0x158] sm:$0xff]
    %v129 = vld [vmem:[#allocation4 + $0x160] sm:$0xff]
    %v130 = vld [vmem:[#allocation4 + $0x168] sm:$0xff]
    %v131 = vld [vmem:[#allocation4 + $0x170] sm:$0xff]
    %v132 = vld [vmem:[#allocation4 + $0x178] sm:$0xff]
    %v133 = vld [vmem:[#allocation4 + $0x180] sm:$0xff]
    %v134 = vld [vmem:[#allocation4 + $0x188] sm:$0xff]
    %v135 = vld [vmem:[#allocation4 + $0x190] sm:$0xff]
    %v136 = vld [vmem:[#allocation4 + $0x198] sm:$0xff]
    %v137 = vld [vmem:[#allocation4 + $0x1a0] sm:$0xff]
    %v138 = vld [vmem:[#allocation4 + $0x1a8] sm:$0xff]
    %v139 = vld [vmem:[#allocation4 + $0x1b0] sm:$0xff]
    %v140 = vld [vmem:[#allocation4 + $0x1b8] sm:$0xff]
    %v141 = vld [vmem:[#allocation4 + $0x1c0] sm:$0xff]
    %v142 = vld [vmem:[#allocation4 + $0x1c8] sm:$0xff]
    %v143 = vld [vmem:[#allocation4 + $0x1d0] sm:$0xff]
    %v144 = vld [vmem:[#allocation4 + $0x1d8] sm:$0xff]
    %v145 = vld [vmem:[#allocation4 + $0x1e0] sm:$0xff]
    %v146 = vld [vmem:[#allocation4 + $0x1e8] sm:$0xff]
    %v147 = vld [vmem:[#allocation4 + $0x1f0] sm:$0xff]
    %v148 = vld [vmem:[#allocation4 + $0x1f8] sm:$0xff]
    %v149 = vld [vmem:[#allocation4 + $0x200] sm:$0xff]
    %v150 = vld [vmem:[#allocation4 + $0x208] sm:$0xff]
    %v151 = vld [vmem:[#allocation4 + $0x210] sm:$0xff]
    %v152 = vld [vmem:[#allocation4 + $0x218] sm:$0xff]
    %v153 = vld [vmem:[#allocation4 + $0x220] sm:$0xff]
    %v154 = vld [vmem:[#allocation4 + $0x228] sm:$0xff]
    %v155 = vld [vmem:[#allocation4 + $0x230] sm:$0xff]
    %v156 = vld [vmem:[#allocation4 + $0x238] sm:$0xff]
    %v157 = vld [vmem:[#allocation4 + $0x240] sm:$0xff]
    %v158 = vld [vmem:[#allocation4 + $0x248] sm:$0xff]
    %v159 = vld [vmem:[#allocation4 + $0x250] sm:$0xff]
    %v160 = vld [vmem:[#allocation4 + $0x258] sm:$0xff]
    %v161 = vld [vmem:[#allocation4 + $0x260] sm:$0xff]
    %v162 = vld [vmem:[#allocation4 + $0x268] sm:$0xff]
    %v163 = vld [vmem:[#allocation4 + $0x270] sm:$0xff]
    %v164 = vld [vmem:[#allocation4 + $0x278] sm:$0xff]
    %v165 = vld [vmem:[#allocation4 + $0x280] sm:$0xff]
    %v166 = vld [vmem:[#allocation4 + $0x288] sm:$0xff]
    %v167 = vld [vmem:[#allocation4 + $0x290] sm:$0xff]
    %v168 = vld [vmem:[#allocation4 + $0x298] sm:$0xff]
    %v169 = vld [vmem:[#allocation4 + $0x2a0] sm:$0xff]
    %v170 = vld [vmem:[#allocation4 + $0x2a8] sm:$0xff]
    %v171 = vld [vmem:[#allocation4 + $0x2b0] sm:$0xff]
    %v172 = vld [vmem:[#allocation4 + $0x2b8] sm:$0xff]
    %v173 = vld [vmem:[#allocation4 + $0x2c0] sm:$0xff]
    %v174 = vld [vmem:[#allocation4 + $0x2c8] sm:$0xff]
    %v175 = vld [vmem:[#allocation4 + $0x2d0] sm:$0xff]
    %v176 = vld [vmem:[#allocation4 + $0x2d8] sm:$0xff]
    %v177 = vld [vmem:[#allocation4 + $0x2e0] sm:$0xff]
    %v178 = vld [vmem:[#allocation4 + $0x2e8] sm:$0xff]
    %v179 = vld [vmem:[#allocation4 + $0x2f0] sm:$0xff]
    %v180 = vld [vmem:[#allocation4 + $0x2f8] sm:$0xff]
    %v181 = vld [vmem:[#allocation4 + $0x300] sm:$0xff]
    %v182 = vld [vmem:[#allocation4 + $0x308] sm:$0xff]
    %v183 = vld [vmem:[#allocation4 + $0x310] sm:$0xff]
    %v184 = vld [vmem:[#allocation4 + $0x318] sm:$0xff]
    %v185 = vld [vmem:[#allocation4 + $0x320] sm:$0xff]
    %v186 = vld [vmem:[#allocation4 + $0x328] sm:$0xff]
    %v187 = vld [vmem:[#allocation4 + $0x330] sm:$0xff]
    %v188 = vld [vmem:[#allocation4 + $0x338] sm:$0xff]
    %v189 = vld [vmem:[#allocation4 + $0x340] sm:$0xff]
    %v190 = vld [vmem:[#allocation4 + $0x348] sm:$0xff]
    %v191 = vld [vmem:[#allocation4 + $0x350] sm:$0xff]
    %v192 = vld [vmem:[#allocation4 + $0x358] sm:$0xff]
    %v193 = vld [vmem:[#allocation4 + $0x360] sm:$0xff]
    %v194 = vld [vmem:[#allocation4 + $0x368] sm:$0xff]
    %v195 = vld [vmem:[#allocation4 + $0x370] sm:$0xff]
    %v196 = vld [vmem:[#allocation4 + $0x378] sm:$0xff]
    %v197 = vld [vmem:[#allocation4 + $0x380] sm:$0xff]
    %v198 = vld [vmem:[#allocation4 + $0x388] sm:$0xff]
    %v199 = vld [vmem:[#allocation4 + $0x390] sm:$0xff]
    %v200 = vld [vmem:[#allocation4 + $0x398] sm:$0xff]
    %v201 = vld [vmem:[#allocation4 + $0x3a0] sm:$0xff]
    %v202 = vld [vmem:[#allocation4 + $0x3a8] sm:$0xff]
    %v203 = vld [vmem:[#allocation4 + $0x3b0] sm:$0xff]
    %v204 = vld [vmem:[#allocation4 + $0x3b8] sm:$0xff]
    %v205 = vld [vmem:[#allocation4 + $0x3c0] sm:$0xff]
    %v206 = vld [vmem:[#allocation4 + $0x3c8] sm:$0xff]
    %v207 = vld [vmem:[#allocation4 + $0x3d0] sm:$0xff]
    %v208 = vld [vmem:[#allocation4 + $0x3d8] sm:$0xff]
    %v209 = vld [vmem:[#allocation4 + $0x3e0] sm:$0xff]
    %v210 = vld [vmem:[#allocation4 + $0x3e8] sm:$0xff]
    %v211 = vld [vmem:[#allocation4 + $0x3f0] sm:$0xff]
    %v212 = vld [vmem:[#allocation4 + $0x3f8] sm:$0xff]
    %vm213 = vcmask 261120
    %v214 = vsel %vm213, %v76, 0
    %v217 = vsel %vm213, %v85, 0
    %v220 = vsel %vm213, %v86, 0
    %v223 = vsel %vm213, %v87, 0
    %v226 = vsel %vm213, %v88, 0
    %v229 = vsel %vm213, %v89, 0
    %v232 = vsel %vm213, %v90, 0
    %v235 = vsel %vm213, %v91, 0
    %v238 = vsel %vm213, %v92, 0
    %v241 = vsel %vm213, %v93, 0
    %v244 = vsel %vm213, %v94, 0
    %v247 = vsel %vm213, %v95, 0
    %v250 = vsel %vm213, %v96, 0
    %v253 = vsel %vm213, %v97, 0
    %v256 = vsel %vm213, %v98, 0
    %v259 = vsel %vm213, %v99, 0
    %v262 = vsel %vm213, %v100, 0
    %264 = vmatpush.xpose.msra.mxu0 %v262
    %265 = vmatpush.xpose.msra.mxu0 %v259
    %266 = vmatpush.xpose.msra.mxu0 %v256
    %267 = vmatpush.xpose.msra.mxu0 %v253
    %268 = vmatpush.xpose.msra.mxu0 %v250
    %269 = vmatpush.xpose.msra.mxu0 %v247
    %270 = vmatpush.xpose.msra.mxu0 %v244
    %271 = vmatpush.xpose.msra.mxu0 %v241
    %272 = vmatpush.xpose.msra.mxu0 %v238
    %273 = vmatpush.xpose.msra.mxu0 %v235
    %274 = vmatpush.xpose.msra.mxu0 %v232
    %275 = vmatpush.xpose.msra.mxu0 %v229
    %276 = vmatpush.xpose.msra.mxu0 %v226
    %277 = vmatpush.xpose.msra.mxu0 %v223
    %278 = vmatpush.xpose.msra.mxu0 %v220
    %279 = vmatpush.xpose.msra.mxu0 %v217
    %280 = vmatmul.f32.gmra.mxu0 %v214
    %v281 = vpop.f32.mrf.mxu0
    %v282 = vadd.f32 0.0, %v281
    %283 = vdwg.mxu0
    %v284 = vsel %vm213, %v78, 0
    %v287 = vsel %vm213, %v101, 0
    %v290 = vsel %vm213, %v102, 0
    %v293 = vsel %vm213, %v103, 0
    %v296 = vsel %vm213, %v104, 0
    %v299 = vsel %vm213, %v105, 0
    %v302 = vsel %vm213, %v106, 0
    %v305 = vsel %vm213, %v107, 0
    %v308 = vsel %vm213, %v108, 0
    %v311 = vsel %vm213, %v109, 0
    %v314 = vsel %vm213, %v110, 0
    %v317 = vsel %vm213, %v111, 0
    %v320 = vsel %vm213, %v112, 0
    %v323 = vsel %vm213, %v113, 0
    %v326 = vsel %vm213, %v114, 0
    %v329 = vsel %vm213, %v115, 0
    %v332 = vsel %vm213, %v116, 0
    %334 = vmatpush.xpose.msra.mxu0 %v332
    %335 = vmatpush.xpose.msra.mxu0 %v329
    %336 = vmatpush.xpose.msra.mxu0 %v326
    %337 = vmatpush.xpose.msra.mxu0 %v323
    %338 = vmatpush.xpose.msra.mxu0 %v320
    %339 = vmatpush.xpose.msra.mxu0 %v317
    %340 = vmatpush.xpose.msra.mxu0 %v314
    %341 = vmatpush.xpose.msra.mxu0 %v311
    %342 = vmatpush.xpose.msra.mxu0 %v308
    %343 = vmatpush.xpose.msra.mxu0 %v305
    %344 = vmatpush.xpose.msra.mxu0 %v302
    %345 = vmatpush.xpose.msra.mxu0 %v299
    %346 = vmatpush.xpose.msra.mxu0 %v296
    %347 = vmatpush.xpose.msra.mxu0 %v293
    %348 = vmatpush.xpose.msra.mxu0 %v290
    %349 = vmatpush.xpose.msra.mxu0 %v287
    %350 = vmatmul.f32.gmra.mxu0 %v284
    %v351 = vpop.f32.mrf.mxu0
    %v352 = vadd.f32 0.0, %v351
    %353 = vdwg.mxu0
    %v354 = vsel %vm213, %v79, 0
    %v357 = vsel %vm213, %v117, 0
    %v360 = vsel %vm213, %v118, 0
    %v363 = vsel %vm213, %v119, 0
    %v366 = vsel %vm213, %v120, 0
    %v369 = vsel %vm213, %v121, 0
    %v372 = vsel %vm213, %v122, 0
    %v375 = vsel %vm213, %v123, 0
    %v378 = vsel %vm213, %v124, 0
    %v381 = vsel %vm213, %v125, 0
    %v384 = vsel %vm213, %v126, 0
    %v387 = vsel %vm213, %v127, 0
    %v390 = vsel %vm213, %v128, 0
    %v393 = vsel %vm213, %v129, 0
    %v396 = vsel %vm213, %v130, 0
    %v399 = vsel %vm213, %v131, 0
    %v402 = vsel %vm213, %v132, 0
    %404 = vmatpush.xpose.msra.mxu0 %v402
    %405 = vmatpush.xpose.msra.mxu0 %v399
    %406 = vmatpush.xpose.msra.mxu0 %v396
    %407 = vmatpush.xpose.msra.mxu0 %v393
    %408 = vmatpush.xpose.msra.mxu0 %v390
    %409 = vmatpush.xpose.msra.mxu0 %v387
    %410 = vmatpush.xpose.msra.mxu0 %v384
    %411 = vmatpush.xpose.msra.mxu0 %v381
    %412 = vmatpush.xpose.msra.mxu0 %v378
    %413 = vmatpush.xpose.msra.mxu0 %v375
    %414 = vmatpush.xpose.msra.mxu0 %v372
    %415 = vmatpush.xpose.msra.mxu0 %v369
    %416 = vmatpush.xpose.msra.mxu0 %v366
    %417 = vmatpush.xpose.msra.mxu0 %v363
    %418 = vmatpush.xpose.msra.mxu0 %v360
    %419 = vmatpush.xpose.msra.mxu0 %v357
    %420 = vmatmul.f32.gmra.mxu0 %v354
    %v421 = vpop.f32.mrf.mxu0
    %v422 = vadd.f32 0.0, %v421
    %423 = vdwg.mxu0
    %v424 = vsel %vm213, %v80, 0
    %v427 = vsel %vm213, %v133, 0
    %v430 = vsel %vm213, %v134, 0
    %v433 = vsel %vm213, %v135, 0
    %v436 = vsel %vm213, %v136, 0
    %v439 = vsel %vm213, %v137, 0
    %v442 = vsel %vm213, %v138, 0
    %v445 = vsel %vm213, %v139, 0
    %v448 = vsel %vm213, %v140, 0
    %v451 = vsel %vm213, %v141, 0
    %v454 = vsel %vm213, %v142, 0
    %v457 = vsel %vm213, %v143, 0
    %v460 = vsel %vm213, %v144, 0
    %v463 = vsel %vm213, %v145, 0
    %v466 = vsel %vm213, %v146, 0
    %v469 = vsel %vm213, %v147, 0
    %v472 = vsel %vm213, %v148, 0
    %474 = vmatpush.xpose.msra.mxu0 %v472
    %475 = vmatpush.xpose.msra.mxu0 %v469
    %476 = vmatpush.xpose.msra.mxu0 %v466
    %477 = vmatpush.xpose.msra.mxu0 %v463
    %478 = vmatpush.xpose.msra.mxu0 %v460
    %479 = vmatpush.xpose.msra.mxu0 %v457
    %480 = vmatpush.xpose.msra.mxu0 %v454
    %481 = vmatpush.xpose.msra.mxu0 %v451
    %482 = vmatpush.xpose.msra.mxu0 %v448
    %483 = vmatpush.xpose.msra.mxu0 %v445
    %484 = vmatpush.xpose.msra.mxu0 %v442
    %485 = vmatpush.xpose.msra.mxu0 %v439
    %486 = vmatpush.xpose.msra.mxu0 %v436
    %487 = vmatpush.xpose.msra.mxu0 %v433
    %488 = vmatpush.xpose.msra.mxu0 %v430
    %489 = vmatpush.xpose.msra.mxu0 %v427
    %490 = vmatmul.f32.gmra.mxu0 %v424
    %v491 = vpop.f32.mrf.mxu0
    %v492 = vadd.f32 0.0, %v491
    %493 = vdwg.mxu0
    %v494 = vsel %vm213, %v81, 0
    %v497 = vsel %vm213, %v149, 0
    %v500 = vsel %vm213, %v150, 0
    %v503 = vsel %vm213, %v151, 0
    %v506 = vsel %vm213, %v152, 0
    %v509 = vsel %vm213, %v153, 0
    %v512 = vsel %vm213, %v154, 0
    %v515 = vsel %vm213, %v155, 0
    %v518 = vsel %vm213, %v156, 0
    %v521 = vsel %vm213, %v157, 0
    %v524 = vsel %vm213, %v158, 0
    %v527 = vsel %vm213, %v159, 0
    %v530 = vsel %vm213, %v160, 0
    %v533 = vsel %vm213, %v161, 0
    %v536 = vsel %vm213, %v162, 0
    %v539 = vsel %vm213, %v163, 0
    %v542 = vsel %vm213, %v164, 0
    %544 = vmatpush.xpose.msra.mxu0 %v542
    %545 = vmatpush.xpose.msra.mxu0 %v539
    %546 = vmatpush.xpose.msra.mxu0 %v536
    %547 = vmatpush.xpose.msra.mxu0 %v533
    %548 = vmatpush.xpose.msra.mxu0 %v530
    %549 = vmatpush.xpose.msra.mxu0 %v527
    %550 = vmatpush.xpose.msra.mxu0 %v524
    %551 = vmatpush.xpose.msra.mxu0 %v521
    %552 = vmatpush.xpose.msra.mxu0 %v518
    %553 = vmatpush.xpose.msra.mxu0 %v515
    %554 = vmatpush.xpose.msra.mxu0 %v512
    %555 = vmatpush.xpose.msra.mxu0 %v509
    %556 = vmatpush.xpose.msra.mxu0 %v506
    %557 = vmatpush.xpose.msra.mxu0 %v503
    %558 = vmatpush.xpose.msra.mxu0 %v500
    %559 = vmatpush.xpose.msra.mxu0 %v497
    %560 = vmatmul.f32.gmra.mxu0 %v494
    %v561 = vpop.f32.mrf.mxu0
    %v562 = vadd.f32 0.0, %v561
    %563 = vdwg.mxu0
    %v564 = vsel %vm213, %v82, 0
    %v567 = vsel %vm213, %v165, 0
    %v570 = vsel %vm213, %v166, 0
    %v573 = vsel %vm213, %v167, 0
    %v576 = vsel %vm213, %v168, 0
    %v579 = vsel %vm213, %v169, 0
    %v582 = vsel %vm213, %v170, 0
    %v585 = vsel %vm213, %v171, 0
    %v588 = vsel %vm213, %v172, 0
    %v591 = vsel %vm213, %v173, 0
    %v594 = vsel %vm213, %v174, 0
    %v597 = vsel %vm213, %v175, 0
    %v600 = vsel %vm213, %v176, 0
    %v603 = vsel %vm213, %v177, 0
    %v606 = vsel %vm213, %v178, 0
    %v609 = vsel %vm213, %v179, 0
    %v612 = vsel %vm213, %v180, 0
    %614 = vmatpush.xpose.msra.mxu0 %v612
    %615 = vmatpush.xpose.msra.mxu0 %v609
    %616 = vmatpush.xpose.msra.mxu0 %v606
    %617 = vmatpush.xpose.msra.mxu0 %v603
    %618 = vmatpush.xpose.msra.mxu0 %v600
    %619 = vmatpush.xpose.msra.mxu0 %v597
    %620 = vmatpush.xpose.msra.mxu0 %v594
    %621 = vmatpush.xpose.msra.mxu0 %v591
    %622 = vmatpush.xpose.msra.mxu0 %v588
    %623 = vmatpush.xpose.msra.mxu0 %v585
    %624 = vmatpush.xpose.msra.mxu0 %v582
    %625 = vmatpush.xpose.msra.mxu0 %v579
    %626 = vmatpush.xpose.msra.mxu0 %v576
    %627 = vmatpush.xpose.msra.mxu0 %v573
    %628 = vmatpush.xpose.msra.mxu0 %v570
    %629 = vmatpush.xpose.msra.mxu0 %v567
    %630 = vmatmul.f32.gmra.mxu0 %v564
    %v631 = vpop.f32.mrf.mxu0
    %v632 = vadd.f32 0.0, %v631
    %633 = vdwg.mxu0
    %v634 = vsel %vm213, %v83, 0
    %v637 = vsel %vm213, %v181, 0
    %v640 = vsel %vm213, %v182, 0
    %v643 = vsel %vm213, %v183, 0
    %v646 = vsel %vm213, %v184, 0
    %v649 = vsel %vm213, %v185, 0
    %v652 = vsel %vm213, %v186, 0
    %v655 = vsel %vm213, %v187, 0
    %v658 = vsel %vm213, %v188, 0
    %v661 = vsel %vm213, %v189, 0
    %v664 = vsel %vm213, %v190, 0
    %v667 = vsel %vm213, %v191, 0
    %v670 = vsel %vm213, %v192, 0
    %v673 = vsel %vm213, %v193, 0
    %v676 = vsel %vm213, %v194, 0
    %v679 = vsel %vm213, %v195, 0
    %v682 = vsel %vm213, %v196, 0
    %684 = vmatpush.xpose.msra.mxu0 %v682
    %685 = vmatpush.xpose.msra.mxu0 %v679
    %686 = vmatpush.xpose.msra.mxu0 %v676
    %687 = vmatpush.xpose.msra.mxu0 %v673
    %688 = vmatpush.xpose.msra.mxu0 %v670
    %689 = vmatpush.xpose.msra.mxu0 %v667
    %690 = vmatpush.xpose.msra.mxu0 %v664
    %691 = vmatpush.xpose.msra.mxu0 %v661
    %692 = vmatpush.xpose.msra.mxu0 %v658
    %693 = vmatpush.xpose.msra.mxu0 %v655
    %694 = vmatpush.xpose.msra.mxu0 %v652
    %695 = vmatpush.xpose.msra.mxu0 %v649
    %696 = vmatpush.xpose.msra.mxu0 %v646
    %697 = vmatpush.xpose.msra.mxu0 %v643
    %698 = vmatpush.xpose.msra.mxu0 %v640
    %699 = vmatpush.xpose.msra.mxu0 %v637
    %700 = vmatmul.f32.gmra.mxu0 %v634
    %v701 = vpop.f32.mrf.mxu0
    %v702 = vadd.f32 0.0, %v701
    %703 = vdwg.mxu0
    %v704 = vsel %vm213, %v84, 0
    %v707 = vsel %vm213, %v197, 0
    %v710 = vsel %vm213, %v198, 0
    %v713 = vsel %vm213, %v199, 0
    %v716 = vsel %vm213, %v200, 0
    %v719 = vsel %vm213, %v201, 0
    %v722 = vsel %vm213, %v202, 0
    %v725 = vsel %vm213, %v203, 0
    %v728 = vsel %vm213, %v204, 0
    %v731 = vsel %vm213, %v205, 0
    %v734 = vsel %vm213, %v206, 0
    %v737 = vsel %vm213, %v207, 0
    %v740 = vsel %vm213, %v208, 0
    %v743 = vsel %vm213, %v209, 0
    %v746 = vsel %vm213, %v210, 0
    %v749 = vsel %vm213, %v211, 0
    %v752 = vsel %vm213, %v212, 0
    %754 = vmatpush.xpose.msra.mxu0 %v752
    %755 = vmatpush.xpose.msra.mxu0 %v749
    %756 = vmatpush.xpose.msra.mxu0 %v746
    %757 = vmatpush.xpose.msra.mxu0 %v743
    %758 = vmatpush.xpose.msra.mxu0 %v740
    %759 = vmatpush.xpose.msra.mxu0 %v737
    %760 = vmatpush.xpose.msra.mxu0 %v734
    %761 = vmatpush.xpose.msra.mxu0 %v731
    %762 = vmatpush.xpose.msra.mxu0 %v728
    %763 = vmatpush.xpose.msra.mxu0 %v725
    %764 = vmatpush.xpose.msra.mxu0 %v722
    %765 = vmatpush.xpose.msra.mxu0 %v719
    %766 = vmatpush.xpose.msra.mxu0 %v716
    %767 = vmatpush.xpose.msra.mxu0 %v713
    %768 = vmatpush.xpose.msra.mxu0 %v710
    %769 = vmatpush.xpose.msra.mxu0 %v707
    %770 = vmatmul.f32.gmra.mxu0 %v704
    %v771 = vpop.f32.mrf.mxu0
    %v772 = vadd.f32 0.0, %v771
    %773 = vdwg.mxu0
    %v774 = vlaneseq
    %v775 = vand.u32 %v774, 127
    %s776 = smul.u32 0, 128
    %v777 = vstv %s776
    %v778 = vadd.s32 %v775, %v777
    %vm779 = vcmp.lt.s32.totalorder %v778, 8
    %v788 = vrot.slane %v352, 7
    %vm789 = vcmask 1041409
    %v790 = vsel %vm789, %v788, %v282
    %v791 = vrot.slane %v422, 6
    %vm792 = vcmask 1042434
    %v793 = vsel %vm792, %v791, %v790
    %v794 = vrot.slane %v492, 5
    %vm795 = vcmask 1043459
    %v796 = vsel %vm795, %v794, %v793
    %v797 = vrot.slane %v562, 4
    %vm798 = vcmask 1044484
    %v799 = vsel %vm798, %v797, %v796
    %v800 = vrot.slane %v632, 3
    %vm801 = vcmask 1045509
    %v802 = vsel %vm801, %v800, %v799
    %v803 = vrot.slane %v702, 2
    %vm804 = vcmask 1046534
    %v805 = vsel %vm804, %v803, %v802
    %v806 = vrot.slane %v772, 1
    %vm807 = vcmask 1047559
    %v808 = vsel %vm807, %v806, %v805
    %v810 = vsel %vm779, %v808, -inf
    %s811 = sshra.s32 %s776, 7
    %s812 = sand.u32 %s776, 127
    %s813 = scalar_lea.vmem [#allocation9], %s811
    %814 = vst [vmem:[%s813] sm:$0xff] %v810
    %v815 = vld [vmem:[#allocation2] sm:$0xff]
    %816 = vmax.xlane.f32.xlu0 %v810
    %v817 = vpop.xlane.xlu0 %816
    %v818 = vmax.f32 %v815, %v817
    %v819 = vld [vmem:[#allocation3] sm:$0xff]
    %v820 = vsub.f32 %v815, %v818
    %v821 = vmul.f32 %v820, 1.442695
    %v822 = vpow.pop %v821
    %v823 = vmul.f32 %v819, %v822
    %825 = vset.pattern.permute.xlu0 0
    %826 = vperm.xlu0 %825, %v818
    %v827 = vpop.permute.xlu0 %826
    %v829 = vsub.f32 %v810, %v827
    %v830 = vmul.f32 %v829, 1.442695
    %v831 = vpow.pop %v830
    %832 = vadd.xlane.f32.xlu0 %v831
    %v833 = vpop.xlane.xlu0 %832
    %v834 = vadd.f32 %v823, %v833
    %vm835 = vcmask 7168
    %836 = vst.msk [vmem:[#allocation3] sm:$0xff] %vm835, %v834
    %837 = vst.msk [vmem:[#allocation2] sm:$0xff] %vm835, %v818
    // Predicated region
    $region22: #{tpu_custom_call.1} parent=1 // pred_check
      %p838 = pneg %p69
    $region23: #{tpu_custom_call.1} parent=1 // pred_check_branch
      %840 = sbr.rel (%p838) target = $region25
    $region24: #{tpu_custom_call.1} parent=1 // pred_region
      %v841 = vld [vmem:[#allocation2] sm:$0xff]
      %v842 = vld [vmem:[#allocation3] sm:$0xff]
      %v843 = vrcp.pop %v842
      %v844 = vmul.f32 %v842, %v843
      %v845 = vsub.f32 1.0, %v844
      %v846 = vmul.f32 %v843, %v845
      %v847 = vadd.f32 %v843, %v846
      %vm848 = vweird.f32 %v842
      %vm849 = vweird.f32 %v843
      %vm850 = vmor %vm848, %vm849
      %v851 = vsel %vm850, %v843, %v847
      %v852 = vand.u32 2147483647, %v842
      %vm853 = vcmp.eq.f32.partialorder %v852, 8.507059e+37
      %v854 = vand.u32 %v842, 2147483648
      %v855 = vor.u32 1.1754944e-38, %v854
      %v856 = vsel %vm853, %v855, %v851
      %v857 = vld [vmem:[#allocation9] sm:$0xff]
      %859 = vset.pattern.permute.xlu0 0
      %860 = vperm.xlu0 %859, %v841
      %v861 = vpop.permute.xlu0 %860
      %v863 = vsub.f32 %v857, %v861
      %v864 = vmul.f32 %v863, 1.442695
      %v865 = vpow.pop %v864
      %867 = vset.pattern.permute.xlu0 0
      %868 = vperm.xlu0 %867, %v856
      %v869 = vpop.permute.xlu0 %868
      %v871 = vmul.f32 %v865, %v869
      %872 = vst [vmem:[#allocation9] sm:$0xff] %v871
    $region25: #{tpu_custom_call.1} parent=1 // pred_fallthru
      _
    // Predicated region
    $region26: #{tpu_custom_call.1} parent=1 // pred_check
      _
    $region27: #{tpu_custom_call.1} parent=1 // pred_check_branch
      %874 = sbr.rel (0) target = $region29
    $region28: #{tpu_custom_call.1} parent=1 // pred_region
      %876 = vsyncadd [#allocation6], 96
      %s877 = sshll.u32 [#allocation9], 4
      %s878 = int_to_ptr.vmem [resolvable:$true] %s877
      %s879 = sshll.u32 %s2, 4
      %s880 = int_to_ptr.hbm [resolvable:$true] %s879
      %885 = dma.vmem_to_hbm [thread:$0]  %s878, 32, %s880, [#allocation6], 32, 32, 2
    $region29: #{tpu_custom_call.1} parent=1 // pred_fallthru
      _
    // Predicated region
    $region30: #{tpu_custom_call.1} parent=1 // pred_check
      _
    $region31: #{tpu_custom_call.1} parent=1 // pred_check_branch
      %887 = sbr.rel (0) target = $region33
    $region32: #{tpu_custom_call.1} parent=1 // pred_region
      %889 = dma.done [#allocation6], 128
    $region33: #{tpu_custom_call.1} parent=1 // pred_fallthru
      _
    %890 = vsyncpa [#allocation5], 1
    %891 = vsyncpa [#allocation8], 1
    %892 = vsyncpa [#allocation6], 1

</llo_original>
